<compile_context>
chip_gen: v6e
topology: v6e:2x2x1
jax: 0.10.0
libtpu: 0.0.40
codegen_flags: <defaults>
</compile_context>

<pallas_src>
from typing import NamedTuple, Optional, Union

import jax
import jax.numpy as jnp
from jax.experimental import pallas as pl
from jax.experimental.pallas import tpu as pltpu


# ----------------------------------------------------------------------------
# A JAX stand-in for torch.nn.utils.rnn.PackedSequence
# ----------------------------------------------------------------------------
class PackedSequence(NamedTuple):
    data: jnp.ndarray
    batch_sizes: jnp.ndarray
    sorted_indices: Optional[jnp.ndarray]
    unsorted_indices: Optional[jnp.ndarray]


def _round_up(x: int, m: int) -> int:
    return ((x + m - 1) // m) * m


def _cdiv(a: int, b: int) -> int:
    return -(-a // b)


# Conservative per-call VMEM budget: stays under the 32 MiB scoped default on
# v6e/v7x (and well under v7x's 64 MiB physical); we raise v5e's 16 MiB
# scoped default explicitly via vmem_limit_bytes below.
_VMEM_BUDGET = 26 * 1024 * 1024
_VMEM_LIMIT = 32 * 1024 * 1024


# ----------------------------------------------------------------------------
# Kernel A (primary): whole weight VMEM-resident, grid = (T_pad // tm,)
# ----------------------------------------------------------------------------
def _linear_resident_kernel(x_ref, w_ref, b_ref, o_ref):
    # x_ref: (tm, H_pad) in the caller dtype — cast to compute dtype in-kernel
    # w_ref: (H_pad, O_pad) compute dtype (constant block index -> DMA'd once)
    # b_ref: (1, O_pad) f32      o_ref: (tm, O_pad) out dtype
    x = x_ref[...].astype(w_ref.dtype)
    acc = jnp.dot(x, w_ref[...], preferred_element_type=jnp.float32)
    o_ref[...] = (acc + b_ref[...]).astype(o_ref.dtype)


# ----------------------------------------------------------------------------
# Kernel B (fallback for large weights): M x N x K grid, f32 accumulator
# ----------------------------------------------------------------------------
def _linear_tiled_kernel(x_ref, w_ref, b_ref, o_ref, acc_ref):
    k = pl.program_id(2)

    @pl.when(k == 0)
    def _init():
        acc_ref[...] = jnp.zeros_like(acc_ref)

    acc_ref[...] += jnp.dot(x_ref[...].astype(w_ref.dtype), w_ref[...],
                            preferred_element_type=jnp.float32)

    @pl.when(k == pl.num_programs(2) - 1)
    def _finalize():
        o_ref[...] = (acc_ref[...] + b_ref[...]).astype(o_ref.dtype)


# ----------------------------------------------------------------------------
# Wrapper: y = x @ W + b with pre-padded / pre-cast parameters
# ----------------------------------------------------------------------------
def pallas_linear(x: jnp.ndarray, w_padded: jnp.ndarray, b_padded: jnp.ndarray,
                  out_features: int, *, tile_t: int = 512,
                  out_dtype=None) -> jnp.ndarray:
    """x: [T, H]; w_padded: [H_pad, O_pad] (compute dtype, padded at init);
    b_padded: [1, O_pad] f32.  Returns [T, out_features] in out_dtype."""
    T, H = x.shape
    H_pad, O_pad = w_padded.shape
    assert H <= H_pad and out_features <= O_pad
    out_dtype = x.dtype if out_dtype is None else out_dtype

    x_item = jnp.dtype(x.dtype).itemsize
    out_item = jnp.dtype(out_dtype).itemsize
    w_item = jnp.dtype(w_padded.dtype).itemsize
    w_bytes = H_pad * O_pad * w_item

    def resident_footprint(tm_: int) -> int:
        # 2x weight (conservative: default double buffering), double-buffered
        # x and out slabs, bias.
        return (2 * w_bytes + 2 * tm_ * H_pad * x_item
                + 2 * tm_ * O_pad * out_item + 2 * O_pad * 4)

    # ------------------------------------------------------------------ A --
    if resident_footprint(8) <= _VMEM_BUDGET:
        tm = min(tile_t, _round_up(T, 8))
        # give v7x's 2 TensorCores at least 2 grid points when T allows
        if T > 8 and _cdiv(T, tm) < 2:
            tm = _round_up(_cdiv(T, 2), 8)
        # balanced tiles: avoid padding T up to ~2x when just above a multiple
        num_m = _cdiv(T, tm)
        tm = _round_up(_cdiv(T, num_m), 8)
        # shrink tm if the footprint would exceed the VMEM budget (v7x-safe)
        while tm > 8 and resident_footprint(tm) > _VMEM_BUDGET:
            tm = _round_up(_cdiv(tm, 2), 8)
        num_m = _cdiv(T, tm)
        T_pad = num_m * tm

        # Activation pad only when actually needed; no cast in the wrapper —
        # the kernel casts x right before the dot (x is streamed exactly once).
        if T_pad == T and H_pad == H:
            x_p = x
        else:
            x_p = jnp.pad(x, ((0, T_pad - T), (0, H_pad - H)))

        cost = pl.CostEstimate(
            flops=2 * T_pad * H_pad * O_pad,
            transcendentals=0,
            bytes_accessed=(x_p.size * x_item + w_bytes + O_pad * 4
                            + T_pad * O_pad * out_item),
        )

        y_pad = pl.pallas_call(
            _linear_resident_kernel,
            out_shape=jax.ShapeDtypeStruct((T_pad, O_pad), out_dtype),
            grid_spec=pltpu.PrefetchScalarGridSpec(
                num_scalar_prefetch=0,
                grid=(num_m,),
                in_specs=[
                    pl.BlockSpec((tm, H_pad), lambda i: (i, 0)),      # x tile
                    pl.BlockSpec((H_pad, O_pad), lambda i: (0, 0)),   # weight (resident)
                    pl.BlockSpec((1, O_pad), lambda i: (0, 0)),       # bias (resident)
                ],
                out_specs=pl.BlockSpec((tm, O_pad), lambda i: (i, 0)),
            ),
            compiler_params=pltpu.CompilerParams(
                dimension_semantics=("parallel",),
                vmem_limit_bytes=_VMEM_LIMIT),
            cost_estimate=cost,
        )(x_p, w_padded, b_padded)
        return y_pad[:T, :out_features]

    # ------------------------------------------------------------------ B --
    # Large weights: tile M x N x K with an f32 accumulator (rare path).
    tm = min(512, _round_up(T, 8))
    num_m = _cdiv(T, tm)
    tm = _round_up(_cdiv(T, num_m), 8)
    T_pad = _cdiv(T, tm) * tm
    tn = min(512, O_pad)
    tk = min(512, H_pad)
    O_pad2 = _round_up(O_pad, tn)
    H_pad2 = _round_up(H_pad, tk)

    x_p = jnp.pad(x, ((0, T_pad - T), (0, H_pad2 - H)))
    # The weight was already 128-padded & cast at init; the extra pad below
    # only triggers for unusual dims that are not multiples of the tile.
    if O_pad2 == O_pad and H_pad2 == H_pad:
        w_p, b_p = w_padded, b_padded
    else:
        w_p = jnp.pad(w_padded, ((0, H_pad2 - H_pad), (0, O_pad2 - O_pad)))
        b_p = jnp.pad(b_padded, ((0, 0), (0, O_pad2 - O_pad)))

    grid = (T_pad // tm, O_pad2 // tn, H_pad2 // tk)
    cost = pl.CostEstimate(
        flops=2 * T_pad * H_pad2 * O_pad2,
        transcendentals=0,
        bytes_accessed=(x_p.size * x_item + w_p.size * w_item + b_p.size * 4
                        + T_pad * O_pad2 * out_item),
    )

    y_pad = pl.pallas_call(
        _linear_tiled_kernel,
        out_shape=jax.ShapeDtypeStruct((T_pad, O_pad2), out_dtype),
        grid_spec=pltpu.PrefetchScalarGridSpec(
            num_scalar_prefetch=0,
            grid=grid,
            in_specs=[
                pl.BlockSpec((tm, tk), lambda i, j, k: (i, k)),
                pl.BlockSpec((tk, tn), lambda i, j, k: (k, j)),
                pl.BlockSpec((1, tn), lambda i, j, k: (0, j)),
            ],
            out_specs=pl.BlockSpec((tm, tn), lambda i, j, k: (i, j)),
            scratch_shapes=[pltpu.VMEM((tm, tn), jnp.float32)],
        ),
        compiler_params=pltpu.CompilerParams(
            dimension_semantics=("parallel", "parallel", "arbitrary"),
            vmem_limit_bytes=_VMEM_LIMIT),
        cost_estimate=cost,
    )(x_p, w_p, b_p)
    return y_pad[:T, :out_features]


# ----------------------------------------------------------------------------
# packed_fn / Packed, mirroring the PyTorch semantics
# ----------------------------------------------------------------------------
def packed_fn(fn):
    def wrap(x: Union[jnp.ndarray, PackedSequence], *args, **kwargs):
        if isinstance(x, jnp.ndarray):
            return fn(x, *args, **kwargs)
        else:
            data = fn(x.data, *args, **kwargs)
            return PackedSequence(
                data=data,
                batch_sizes=x.batch_sizes,
                sorted_indices=x.sorted_indices,
                unsorted_indices=x.unsorted_indices,
            )
    return wrap


class Packed:
    """Packed(module): applies `module` to a tensor or to PackedSequence.data."""

    def __init__(self, module):
        self.module = module

    def __repr__(self):
        return f"Packed{self.module!r}"

    def __call__(self, x, *args, **kwargs):
        return packed_fn(self.module)(x, *args, **kwargs)


class PallasLinear:
    """Deterministically-initialized Linear whose forward is the Pallas kernel.

    Parameters are padded to TPU-friendly multiples and cast to the compute
    dtype ONCE at construction time, so each forward does zero per-call weight
    pad/convert work.
    """

    def __init__(self, in_features: int, out_features: int, key,
                 compute_dtype=jnp.bfloat16):
        self.in_features = in_features
        self.out_features = out_features
        self.compute_dtype = compute_dtype

        k_w, k_b = jax.random.split(key)
        bound = 1.0 / (in_features ** 0.5)  # PyTorch nn.Linear init
        # weight stored already transposed: [in_features, out_features]
        self.w_t = jax.random.uniform(
            k_w, (in_features, out_features), jnp.float32, -bound, bound)
        self.b = jax.random.uniform(
            k_b, (out_features,), jnp.float32, -bound, bound)

        H_pad = _round_up(in_features, 128)
        O_pad = _round_up(out_features, 128)
        self.w_padded = jnp.pad(
            self.w_t, ((0, H_pad - in_features), (0, O_pad - out_features))
        ).astype(compute_dtype)
        self.b_padded = jnp.pad(
            self.b, (0, O_pad - out_features)
        ).astype(jnp.float32).reshape(1, O_pad)

    def __repr__(self):
        return (f"PallasLinear({self.in_features}, {self.out_features}, "
                f"compute_dtype={jnp.dtype(self.compute_dtype).name})")

    def __call__(self, x):
        return pallas_linear(x, self.w_padded, self.b_padded, self.out_features)


# ----------------------------------------------------------------------------
# Demo
# ----------------------------------------------------------------------------
if __name__ == "__main__":
    key = jax.random.PRNGKey(0)
    k_data, k_mod = jax.random.split(key)

    batch, seq, hidden, out = 2, 8, 32, 32
    total_tokens = batch * seq  # fully-packed (all sequences same length)

    # Build a PackedSequence-like input (data: [total_tokens, hidden])
    data = jax.random.normal(k_data, (total_tokens, hidden), jnp.float32)
    batch_sizes = jnp.full((seq,), batch, dtype=jnp.int32)
    sorted_indices = jnp.arange(batch, dtype=jnp.int32)
    unsorted_indices = jnp.arange(batch, dtype=jnp.int32)
    packed_input = PackedSequence(data, batch_sizes, sorted_indices, unsorted_indices)

    # Default (bf16 compute) module — the performance path.
    module = Packed(PallasLinear(hidden, out, k_mod))

    # 1) PackedSequence path
    packed_out = module(packed_input)
    jax.block_until_ready(packed_out.data)

    # 2) Plain tensor path
    tensor_out = module(data)
    jax.block_until_ready(tensor_out)

    # Reference (f32) and checks.  bf16-compute tolerance is loose by design.
    ref = data @ module.module.w_t + module.module.b
    assert packed_out.data.shape == (total_tokens, out)
    assert packed_out.data.dtype == data.dtype
    assert jnp.allclose(packed_out.data, ref, atol=5e-2, rtol=5e-2)
    assert jnp.allclose(tensor_out, ref, atol=5e-2, rtol=5e-2)
    assert packed_out.batch_sizes is batch_sizes
    assert packed_out.sorted_indices is sorted_indices
    assert packed_out.unsorted_indices is unsorted_indices

    # 3) f32-compute module (exposed compute_dtype addresses the numerics
    #    concern): same kernel, tight tolerance.
    module_f32 = Packed(PallasLinear(hidden, out, k_mod, compute_dtype=jnp.float32))
    out_f32 = module_f32(packed_input)
    jax.block_until_ready(out_f32.data)
    ref_f32 = data @ module_f32.module.w_t + module_f32.module.b
    assert jnp.allclose(out_f32.data, ref_f32, atol=1e-4, rtol=1e-4)

    print("KERNEL_OK")
</pallas_src>

<mosaic_0001>
module attributes {stable_mosaic.version = 11 : i64} {
  func.func @_linear_resident_kernel(%arg0: i32, %arg1: memref<8x128xf32, #tpu.memory_space<vmem>>, %arg2: memref<128x128xbf16, #tpu.memory_space<vmem>>, %arg3: memref<1x128xf32, #tpu.memory_space<vmem>>, %arg4: memref<8x128xf32, #tpu.memory_space<vmem>>) attributes {dimension_semantics = [#tpu.dimension_semantics<parallel>], iteration_bounds = array<i64: 2>, scalar_prefetch = 0 : i64, scratch_operands = 0 : i64, tpu.core_type = #tpu.core_type<tc>, window_params = [{transform_indices = @transform_0, window_bounds = array<i64: 8, 128>}, {pipeline_mode = #tpu.pipeline_mode<synchronous>, transform_indices = @transform_1, window_bounds = array<i64: 128, 128>}, {pipeline_mode = #tpu.pipeline_mode<synchronous>, transform_indices = @transform_2, window_bounds = array<i64: 1, 128>}, {transform_indices = @transform_3, window_bounds = array<i64: 8, 128>}]} {
    %c0 = arith.constant 0 : index
    %c0_0 = arith.constant 0 : index
    %0 = vector.load %arg1[%c0, %c0_0] : memref<8x128xf32, #tpu.memory_space<vmem>>, vector<8x128xf32>
    %1 = arith.truncf %0 : vector<8x128xf32> to vector<8x128xbf16>
    %c0_1 = arith.constant 0 : index
    %c0_2 = arith.constant 0 : index
    %2 = vector.load %arg2[%c0_1, %c0_2] : memref<128x128xbf16, #tpu.memory_space<vmem>>, vector<128x128xbf16>
    %cst = arith.constant dense<0.000000e+00> : vector<8x128xf32>
    %3 = tpu.matmul %1, %2, %cst {dimension_numbers = #tpu.dot_dimension_numbers<[1], [0], [0], [1], [0, 0, 1, 1], [], []>} : vector<8x128xbf16>, vector<128x128xbf16>, vector<8x128xf32> -> vector<8x128xf32>
    %c0_3 = arith.constant 0 : index
    %c0_4 = arith.constant 0 : index
    %4 = vector.load %arg3[%c0_3, %c0_4] : memref<1x128xf32, #tpu.memory_space<vmem>>, vector<1x128xf32>
    %5 = vector.broadcast %4 : vector<1x128xf32> to vector<8x128xf32>
    %6 = arith.addf %3, %5 : vector<8x128xf32>
    %c0_5 = arith.constant 0 : index
    %c0_6 = arith.constant 0 : index
    %7 = vector.load %arg4[%c0_5, %c0_6] : memref<8x128xf32, #tpu.memory_space<vmem>>, vector<8x128xf32>
    tpu.vector_store %arg4[%c0_5, %c0_6], %6 {strides = array<i32>} : memref<8x128xf32, #tpu.memory_space<vmem>>, vector<8x128xf32>,
    return
  }
  func.func @transform_0(%arg0: i32) -> (i32, i32) {
    %c0_i32 = arith.constant 0 : i32
    %c0_i32_0 = arith.constant 0 : i32
    return %arg0, %c0_i32 : i32, i32
  }
  func.func @transform_1(%arg0: i32) -> (i32, i32) {
    %c0_i32 = arith.constant 0 : i32
    %c0_i32_0 = arith.constant 0 : i32
    %c0_i32_1 = arith.constant 0 : i32
    return %c0_i32, %c0_i32_0 : i32, i32
  }
  func.func @transform_2(%arg0: i32) -> (i32, i32) {
    %c0_i32 = arith.constant 0 : i32
    %c0_i32_0 = arith.constant 0 : i32
    %c0_i32_1 = arith.constant 0 : i32
    return %c0_i32, %c0_i32_0 : i32, i32
  }
  func.func @transform_3(%arg0: i32) -> (i32, i32) {
    %c0_i32 = arith.constant 0 : i32
    %c0_i32_0 = arith.constant 0 : i32
    return %arg0, %c0_i32 : i32, i32
  }
}

</mosaic_0001>

<llo_original>
// kernel: tpu_custom_call.1
$region0: #{tpu_custom_call.1}
  #allocation0 [shape = 'u32[]', space=smem, size = 0x4, offset = 0x4, fixed_abs, tag = 'smem constant byte address 0x4 - core index']
  #allocation1 [shape = 'u32[144,128]{1,0:T(1,128)}', space=vmem, size = 0x12000, scoped, tag = 'internal scratch']
  %s0 = inlined_call_operand.hbm [shape: f32[16,128], index: 0, kind: input, shape index: {}]
  %s1 = inlined_call_operand.hbm [shape: bf16[128,128], index: 1, kind: input, shape index: {}]
  %s2 = inlined_call_operand.vmem [shape: f32[1,128], index: 2, kind: input, shape index: {}]
  %s3 = inlined_call_operand.hbm [shape: f32[16,128], index: 3, kind: output, shape index: {}]
  %s4 = sld [smem:[#allocation0]]
  $region53: #{tpu_custom_call.1} parent=0
    _
  %s6 = ssub.s32 1, %s4
  %s7 = scalar_select 0, %s6, %s4
  $region1: #{tpu_custom_call.1} parent=0
    #allocation2 [shape = 'u8[8192]{0}', space=vmem, size = 0x2000, scoped, tag = 'input window, operand 0']
    #allocation3 [shape = 's32[2]{0}', space=sflag, size = 0x8, scoped, tag = 'scoped memory for tpu_custom_call.1']
    #allocation4 [shape = 's32[2]{0}', space=sflag, size = 0x8, scoped, tag = 'scoped memory for tpu_custom_call.1']
    #allocation5 [shape = 'u8[32768]{0}', space=vmem, size = 0x8000, scoped, tag = 'input window, operand 1, single buffered']
    #allocation6 [shape = 's32[1]{0}', space=sflag, size = 0x4, scoped, tag = 'scoped memory for tpu_custom_call.1']
    #allocation7 [shape = 'u8[8192]{0}', space=vmem, size = 0x2000, scoped, tag = 'output window, operand 0']
    %8 = vsyncpa [#allocation3], 0
    %s9 = scalar_lea.sflag [#allocation3], 1
    %10 = vsyncpa %s9, 0
    %11 = vsyncpa [#allocation6], 0
    %12 = vsyncpa [#allocation4], 0
    %s13 = scalar_lea.sflag [#allocation4], 1
    %14 = vsyncpa %s13, 0
    loop: start=0, step=1, limit=4
    $region2: #{tpu_custom_call.1} parent=1 // loop_pre_header
      _
    $region3: #{tpu_custom_call.1} parent=1 // loop_header
      %s16 = sphi 0, %s20
      %p17 = scmp.ge.s32.totalorder %s16, 4
      %s26 = sphi 0, %s28
      %s29 = sphi 0, %s26
      %s30 = sphi 0, %s29
      %s46 = sphi 0, %s30
      %s50 = sphi 0, %s50
      %s52 = sphi 0, %s50
      %s53 = sphi 0, %s52
      %s67 = sphi 0, %s53
      %s71 = sphi 0, %s71
      %s73 = sphi 0, %s71
      %s74 = sphi 0, %s73
      %s88 = sphi 0, %s74
      %s94 = sphi 0, %s96
      %s97 = sphi 0, %s94
      %s98 = sphi 0, %s97
      %s114 = sphi 0, %s98
    $region4: #{tpu_custom_call.1} parent=1 // loop_header_branch
      %19 = sbr.rel (%p17) target = $region8
    $region5: #{tpu_custom_call.1} parent=1 // loop_body
      %s21 = ssub.s32 %s16, 1
      %s22 = ssub.s32 %s16, 2
      %s23 = sadd.s32 %s16, 1
      %s24 = ssub.s32 %s16, %s23
      %p25 = scmp.eq.s32.totalorder %s24, 0
      %s27 = sadd.s32 %s26, 1
      %s28 = scalar_select %p25, %s26, %s27
      %p31 = pneg %p25
      %p32 = scmp.eq.s32.totalorder %s16, 1
      %p33 = por %p31, %p32
      %p34 = scmp.ne.s32.totalorder %s26, %s29
      %p35 = scmp.eq.s32.totalorder %s16, 0
      %p36 = por %p34, %p35
      %p37 = scmp.ne.s32.totalorder %s26, %s29
      %p38 = scmp.eq.s32.totalorder %s21, 1
      %p39 = por %p37, %p38
      %p40 = scmp.ne.s32.totalorder %s29, %s30
      %p41 = scmp.eq.s32.totalorder %s21, 0
      %p42 = por %p40, %p41
      %p43 = scmp.ne.s32.totalorder %s29, %s30
      %p44 = scmp.eq.s32.totalorder %s22, 1
      %p45 = por %p43, %p44
      %p47 = scmp.ne.s32.totalorder %s30, %s46
      %p48 = scmp.eq.s32.totalorder %s22, 0
      %p49 = por %p47, %p48
      %s51 = sadd.s32 %s50, 1
      %p54 = scmp.eq.s32.totalorder %s16, 1
      %p55 = scmp.ne.s32.totalorder %s50, %s52
      %p56 = scmp.eq.s32.totalorder %s16, 0
      %p57 = por %p55, %p56
      %p58 = scmp.ne.s32.totalorder %s50, %s52
      %p59 = scmp.eq.s32.totalorder %s21, 1
      %p60 = por %p58, %p59
      %p61 = scmp.ne.s32.totalorder %s52, %s53
      %p62 = scmp.eq.s32.totalorder %s21, 0
      %p63 = por %p61, %p62
      %p64 = scmp.ne.s32.totalorder %s52, %s53
      %p65 = scmp.eq.s32.totalorder %s22, 1
      %p66 = por %p64, %p65
      %p68 = scmp.ne.s32.totalorder %s53, %s67
      %p69 = scmp.eq.s32.totalorder %s22, 0
      %p70 = por %p68, %p69
      %s72 = sadd.s32 %s71, 1
      %p75 = scmp.eq.s32.totalorder %s16, 1
      %p76 = scmp.ne.s32.totalorder %s71, %s73
      %p77 = scmp.eq.s32.totalorder %s16, 0
      %p78 = por %p76, %p77
      %p79 = scmp.ne.s32.totalorder %s71, %s73
      %p80 = scmp.eq.s32.totalorder %s21, 1
      %p81 = por %p79, %p80
      %p82 = scmp.ne.s32.totalorder %s73, %s74
      %p83 = scmp.eq.s32.totalorder %s21, 0
      %p84 = por %p82, %p83
      %p85 = scmp.ne.s32.totalorder %s73, %s74
      %p86 = scmp.eq.s32.totalorder %s22, 1
      %p87 = por %p85, %p86
      %p89 = scmp.ne.s32.totalorder %s74, %s88
      %p90 = scmp.eq.s32.totalorder %s22, 0
      %p91 = por %p89, %p90
      %s92 = ssub.s32 %s16, %s23
      %p93 = scmp.eq.s32.totalorder %s92, 0
      %s95 = sadd.s32 %s94, 1
      %s96 = scalar_select %p93, %s94, %s95
      %p99 = pneg %p93
      %p100 = scmp.eq.s32.totalorder %s16, 1
      %p101 = por %p99, %p100
      %p102 = scmp.ne.s32.totalorder %s94, %s97
      %p103 = scmp.eq.s32.totalorder %s16, 0
      %p104 = por %p102, %p103
      %p105 = scmp.ne.s32.totalorder %s94, %s97
      %p106 = scmp.eq.s32.totalorder %s21, 1
      %p107 = por %p105, %p106
      %p108 = scmp.ne.s32.totalorder %s97, %s98
      %p109 = scmp.eq.s32.totalorder %s21, 0
      %p110 = por %p108, %p109
      %p111 = scmp.ne.s32.totalorder %s97, %s98
      %p112 = scmp.eq.s32.totalorder %s22, 1
      %p113 = por %p111, %p112
      %p115 = scmp.ne.s32.totalorder %s98, %s114
      %p116 = scmp.eq.s32.totalorder %s22, 0
      %p117 = por %p115, %p116
      %p118 = scmp.le.s32.totalorder 1, %s16
      %p119 = scmp.lt.s32.totalorder %s16, 3
      %p120 = pnand %p118, %p119
      %p121 = pneg %p120
      // Predicated region
      $region9: #{tpu_custom_call.1} parent=5 // pred_check
        _
      $region10: #{tpu_custom_call.1} parent=5 // pred_check_branch
        %123 = sbr.rel (%p120) target = $region12
      $region11: #{tpu_custom_call.1} parent=5 // pred_region
        %s124 = ssub.s32 %s16, 1
        // Predicated region
        $region13: #{tpu_custom_call.1} parent=11 // pred_check
          %p125 = pneg %p63
        $region14: #{tpu_custom_call.1} parent=11 // pred_check_branch
          %127 = sbr.rel (%p125) target = $region16
        $region15: #{tpu_custom_call.1} parent=11 // pred_region
          %s129 = ssub.s32 1024, 1024
          %130 = vsyncadd [#allocation6], %s129
          %s131 = sshll.u32 [#allocation5], 4
          %s132 = int_to_ptr.vmem [resolvable:$true] %s131
          %137 = dma.hbm_to_vmem [thread:$0]  %s1, 1024, %s132, [#allocation6], 64, 64, 4
        $region16: #{tpu_custom_call.1} parent=11 // pred_fallthru
          _
        // Predicated region
        $region17: #{tpu_custom_call.1} parent=11 // pred_check
          %p138 = pneg %p84
        $region18: #{tpu_custom_call.1} parent=11 // pred_check_branch
          %140 = sbr.rel (%p138) target = $region20
        $region19: #{tpu_custom_call.1} parent=11 // pred_region
          _
        $region20: #{tpu_custom_call.1} parent=11 // pred_fallthru
          _
      $region12: #{tpu_custom_call.1} parent=5 // pred_fallthru
        _
      %p141 = scmp.lt.s32.totalorder %s16, 2
      // Predicated region
      $region21: #{tpu_custom_call.1} parent=5 // pred_check
        %p142 = pneg %p141
      $region22: #{tpu_custom_call.1} parent=5 // pred_check_branch
        %144 = sbr.rel (%p142) target = $region24
      $region23: #{tpu_custom_call.1} parent=5 // pred_region
        // Predicated region
        $region25: #{tpu_custom_call.1} parent=23 // pred_check
          %p145 = pneg %p36
        $region26: #{tpu_custom_call.1} parent=23 // pred_check_branch
          %147 = sbr.rel (%p145) target = $region28
        $region27: #{tpu_custom_call.1} parent=23 // pred_region
          %s148 = sand.u32 %s26, 1
          %s149 = scalar_lea.sflag [#allocation3], %s148
          %s150 = sand.u32 %s26, 1
          %s151 = smul.addr %s150, 8
          %s152 = scalar_lea.vmem [#allocation2], %s151
          %s154 = ssub.s32 128, 128
          %155 = vsyncadd %s149, %s154
          %s156 = smul.addr %s16, 128
          %s157 = scalar_lea.hbm %s0, %s156
          %s159 = sshll.u32 %s152, 4
          %s160 = int_to_ptr.vmem [resolvable:$true] %s159
          %162 = dma.hbm_to_vmem [thread:$0]  %s157, 128, %s160, %s149
        $region28: #{tpu_custom_call.1} parent=23 // pred_fallthru
          _
      $region24: #{tpu_custom_call.1} parent=5 // pred_fallthru
        _
      %p163 = scmp.le.s32.totalorder 1, %s16
      %p164 = scmp.lt.s32.totalorder %s16, 3
      %p165 = pnand %p163, %p164
      %p166 = pneg %p165
      // Predicated region
      $region29: #{tpu_custom_call.1} parent=5 // pred_check
        _
      $region30: #{tpu_custom_call.1} parent=5 // pred_check_branch
        %168 = sbr.rel (%p165) target = $region32
      $region31: #{tpu_custom_call.1} parent=5 // pred_region
        %s169 = ssub.s32 %s16, 1
        %s170 = sand.u32 %s29, 1
        %s171 = scalar_lea.sflag [#allocation3], %s170
        %s172 = sand.u32 %s29, 1
        %s173 = smul.addr %s172, 8
        %s174 = scalar_lea.vmem [#allocation2], %s173
        // Predicated region
        $region33: #{tpu_custom_call.1} parent=31 // pred_check
          %p175 = pneg %p42
        $region34: #{tpu_custom_call.1} parent=31 // pred_check_branch
          %177 = sbr.rel (%p175) target = $region36
        $region35: #{tpu_custom_call.1} parent=31 // pred_region
          %178 = dma.done %s171, 128
        $region36: #{tpu_custom_call.1} parent=31 // pred_fallthru
          _
        // Predicated region
        $region37: #{tpu_custom_call.1} parent=31 // pred_check
          %p179 = pneg %p63
        $region38: #{tpu_custom_call.1} parent=31 // pred_check_branch
          %181 = sbr.rel (%p179) target = $region40
        $region39: #{tpu_custom_call.1} parent=31 // pred_region
          %182 = dma.done [#allocation6], 1024
        $region40: #{tpu_custom_call.1} parent=31 // pred_fallthru
          _
        %s183 = sand.u32 %s29, 1
        %s184 = scalar_lea.sflag [#allocation3], %s183
        %s185 = sand.u32 %s29, 1
        %s186 = smul.addr %s185, 8
        %s187 = scalar_lea.vmem [#allocation2], %s186
        %p188 = pneg %p42
        %p189 = pneg %p39
        %p190 = pneg %p63
        %p191 = pneg %p60
        %p192 = pneg %p84
        %p193 = pneg %p81
        %p194 = pneg %p110
        %p195 = pneg %p107
        %s196 = sand.u32 %s97, 1
        %s197 = scalar_lea.sflag [#allocation4], %s196
        %s198 = sand.u32 %s97, 1
        %s199 = smul.addr %s198, 8
        %s200 = scalar_lea.vmem [#allocation7], %s199
        %v202 = vld [vmem:[%s174] sm:$0xff]
        %v203 = vpack.c.bf16 %v202, %v202
        %v204 = vld [vmem:[#allocation5] sm:$0xf]
        %v205 = vld [vmem:[#allocation5 + $0x4] sm:$0xf]
        %v206 = vld [vmem:[#allocation5 + $0x8] sm:$0xf]
        %v207 = vld [vmem:[#allocation5 + $0xc] sm:$0xf]
        %v208 = vld [vmem:[#allocation5 + $0x10] sm:$0xf]
        %v209 = vld [vmem:[#allocation5 + $0x14] sm:$0xf]
        %v210 = vld [vmem:[#allocation5 + $0x18] sm:$0xf]
        %v211 = vld [vmem:[#allocation5 + $0x1c] sm:$0xf]
        %v212 = vld [vmem:[#allocation5 + $0x20] sm:$0xf]
        %v213 = vld [vmem:[#allocation5 + $0x24] sm:$0xf]
        %v214 = vld [vmem:[#allocation5 + $0x28] sm:$0xf]
        %v215 = vld [vmem:[#allocation5 + $0x2c] sm:$0xf]
        %v216 = vld [vmem:[#allocation5 + $0x30] sm:$0xf]
        %v217 = vld [vmem:[#allocation5 + $0x34] sm:$0xf]
        %v218 = vld [vmem:[#allocation5 + $0x38] sm:$0xf]
        %v219 = vld [vmem:[#allocation5 + $0x3c] sm:$0xf]
        %v220 = vld [vmem:[%s2] sm:$0x1]
        %v222 = vlaneseq
        %v223 = vshrl.u32 %v222, 7
        %v224 = vsub.s32 0, %v223
        %v225 = vrot.slane %v220, %v224
        %v243 = vunpack.c.l.b16 %v204
        %v244 = vunpack.c.l.b16 %v205
        %v245 = vunpack.c.l.b16 %v206
        %v246 = vunpack.c.l.b16 %v207
        %v247 = vunpack.c.l.b16 %v208
        %v248 = vunpack.c.l.b16 %v209
        %v249 = vunpack.c.l.b16 %v210
        %v250 = vunpack.c.l.b16 %v211
        %v251 = vunpack.c.l.b16 %v212
        %v252 = vunpack.c.l.b16 %v213
        %v253 = vunpack.c.l.b16 %v214
        %v254 = vunpack.c.l.b16 %v215
        %v255 = vunpack.c.l.b16 %v216
        %v256 = vunpack.c.l.b16 %v217
        %v257 = vunpack.c.l.b16 %v218
        %v258 = vunpack.c.l.b16 %v219
        %v259 = vpack.c.b16 %v244, %v243
        %v260 = vpack.c.b16 %v246, %v245
        %v261 = vpack.c.b16 %v248, %v247
        %v262 = vpack.c.b16 %v250, %v249
        %v263 = vpack.c.b16 %v252, %v251
        %v264 = vpack.c.b16 %v254, %v253
        %v265 = vpack.c.b16 %v256, %v255
        %v266 = vpack.c.b16 %v258, %v257
        %275 = vmatprep.subr.bf16.mxu0 0
        %276 = vmatpush1.bf16.msra.mxu0 %v266
        %277 = vmatprep.subr.bf16.mxu0 0
        %278 = vmatpush1.bf16.msra.mxu0 %v265
        %279 = vmatprep.subr.bf16.mxu0 0
        %280 = vmatpush1.bf16.msra.mxu0 %v264
        %281 = vmatprep.subr.bf16.mxu0 0
        %282 = vmatpush1.bf16.msra.mxu0 %v263
        %283 = vmatprep.subr.bf16.mxu0 0
        %284 = vmatpush1.bf16.msra.mxu0 %v262
        %285 = vmatprep.subr.bf16.mxu0 0
        %286 = vmatpush1.bf16.msra.mxu0 %v261
        %287 = vmatprep.subr.bf16.mxu0 0
        %288 = vmatpush1.bf16.msra.mxu0 %v260
        %289 = vmatprep.subr.bf16.mxu0 0
        %290 = vmatpush1.bf16.msra.mxu0 %v259
        %291 = vmatprep.subr.bf16.mxu0 0
        %292 = vmatpush2.bf16.msra.mxu0 0
        %293 = vmatprep.subr.bf16.mxu0 0
        %294 = vmatpush2.bf16.msra.mxu0 0
        %295 = vmatprep.subr.bf16.mxu0 0
        %296 = vmatpush2.bf16.msra.mxu0 0
        %297 = vmatprep.subr.bf16.mxu0 0
        %298 = vmatpush2.bf16.msra.mxu0 0
        %299 = vmatprep.subr.bf16.mxu0 0
        %300 = vmatpush2.bf16.msra.mxu0 0
        %301 = vmatprep.subr.bf16.mxu0 0
        %302 = vmatpush2.bf16.msra.mxu0 0
        %303 = vmatprep.subr.bf16.mxu0 0
        %304 = vmatpush2.bf16.msra.mxu0 0
        %305 = vmatprep.subr.bf16.mxu0 0
        %306 = vmatpush2.bf16.msra.mxu0 0
        %307 = vmatprep.mubr.bf16.mxu0 0
        %308 = vmatmul.mubr.bf16.gmra.mxu0 %v203
        %v309 = vpop.f32.mrf.mxu0
        %v310 = vadd.f32 %v225, %v309
        %v311 = vpop.f32.mrf.mxu0
        %v312 = vpop.f32.mrf.mxu0
        %v313 = vpop.f32.mrf.mxu0
        %314 = vdwg.mxu0
        %315 = vst [vmem:[%s200] sm:$0xff] %v310
        %s316 = sand.u32 %s97, 1
        %s317 = scalar_lea.sflag [#allocation4], %s316
        %s318 = sand.u32 %s97, 1
        %s319 = smul.addr %s318, 8
        %s320 = scalar_lea.vmem [#allocation7], %s319
        // Predicated region
        $region41: #{tpu_custom_call.1} parent=31 // pred_check
          %p321 = pneg %p107
        $region42: #{tpu_custom_call.1} parent=31 // pred_check_branch
          %323 = sbr.rel (%p321) target = $region44
        $region43: #{tpu_custom_call.1} parent=31 // pred_region
          %s325 = ssub.s32 128, 128
          %326 = vsyncadd %s317, %s325
          %s327 = smul.addr %s21, 128
          %s328 = scalar_lea.hbm %s3, %s327
          %s330 = sshll.u32 %s320, 4
          %s331 = int_to_ptr.vmem [resolvable:$true] %s330
          %333 = dma.vmem_to_hbm [thread:$0]  %s331, 128, %s328, %s317
        $region44: #{tpu_custom_call.1} parent=31 // pred_fallthru
          _
      $region32: #{tpu_custom_call.1} parent=5 // pred_fallthru
        _
      %p334 = scmp.le.s32.totalorder 2, %s16
      // Predicated region
      $region45: #{tpu_custom_call.1} parent=5 // pred_check
        %p335 = pneg %p334
      $region46: #{tpu_custom_call.1} parent=5 // pred_check_branch
        %337 = sbr.rel (%p335) target = $region48
      $region47: #{tpu_custom_call.1} parent=5 // pred_region
        %s338 = ssub.s32 %s16, 2
        // Predicated region
        $region49: #{tpu_custom_call.1} parent=47 // pred_check
          %p339 = pneg %p113
        $region50: #{tpu_custom_call.1} parent=47 // pred_check_branch
          %341 = sbr.rel (%p339) target = $region52
        $region51: #{tpu_custom_call.1} parent=47 // pred_region
          %s342 = sand.u32 %s98, 1
          %s343 = scalar_lea.sflag [#allocation4], %s342
          %s344 = sand.u32 %s98, 1
          %s345 = smul.addr %s344, 8
          %s346 = scalar_lea.vmem [#allocation7], %s345
          %347 = dma.done %s343, 128
        $region52: #{tpu_custom_call.1} parent=47 // pred_fallthru
          _
      $region48: #{tpu_custom_call.1} parent=5 // pred_fallthru
        _
    $region6: #{tpu_custom_call.1} parent=1 // loop_footer
      %s20 = sadd.s32 1, %s16
    $region7: #{tpu_custom_call.1} parent=1 // loop_footer_branch
      %15 = sbr.rel target = $region3
    $region8: #{tpu_custom_call.1} parent=1 // loop_exit
      _
    %348 = vsyncpa [#allocation3], 1
    %s349 = scalar_lea.sflag [#allocation3], 1
    %350 = vsyncpa %s349, 1
    %351 = vsyncpa [#allocation6], 1
    %352 = vsyncpa [#allocation4], 1
    %s353 = scalar_lea.sflag [#allocation4], 1
    %354 = vsyncpa %s353, 1

</llo_original>
